<compile_context>
chip_gen: v6e
topology: v6e:2x2x1
jax: 0.10.0
libtpu: 0.0.40
codegen_flags: <defaults>
</compile_context>

<pallas_src>
import functools

import jax
import jax.numpy as jnp
from jax.experimental import pallas as pl
from jax.experimental.pallas import tpu as pltpu

LANES = 128     # lane (last-dim) width of the 2-D view
ACC_ROWS = 256  # fixed f32 accumulator height: 256 x 128 x 4 B = 128 KiB each


def _device_profile():
    """Return (per-input block-byte target, multi_core) for the local TPU."""
    try:
        kind = jax.devices()[0].device_kind.lower()
    except Exception:  # pragma: no cover - defensive
        kind = ""
    if "v7" in kind:
        return 4 * 1024 * 1024, True          # ~3.2 TB/s HBM, 2 TCs
    if "v6" in kind:
        return 2 * 1024 * 1024, False         # 1 TC
    if "v5e" in kind or "v5 lite" in kind or "v5lite" in kind:
        return 1 * 1024 * 1024, False         # 16 MiB default scoped VMEM, 1 TC
    if "v4" in kind or "v5" in kind:
        return 2 * 1024 * 1024, True          # v4 / v5p megacore
    return 2 * 1024 * 1024, False             # conservative default


def _masked_mse_kernel(pred_ref, target_ref, mask_ref, out_ref,
                       num_acc, den_acc, *,
                       rows, block_rows, acc_rows, steps, nb,
                       has_tail, has_dup):
    s = pl.program_id(0)   # shard (parallel; maps across TCs on megacore parts)
    j = pl.program_id(1)   # row-block step within the shard (reduction axis)

    @pl.when(j == 0)
    def _():
        num_acc[...] = jnp.zeros_like(num_acc)
        den_acc[...] = jnp.zeros_like(den_acc)

    blk = s * steps + j    # logical (un-clamped) row-block id

    def fold(x):
        # Fold a (block_rows, 128) tile into the (acc_rows, 128) accumulator
        # shape with strided VALU adds (no cross-lane work).
        if block_rows == acc_rows:
            return x
        return x.reshape(block_rows // acc_rows, acc_rows, LANES).sum(axis=0)

    def accumulate(apply_tail_mask):
        p = pred_ref[...].astype(jnp.float32)
        t = target_ref[...].astype(jnp.float32)
        m = mask_ref[...].astype(jnp.float32)
        d = p * m - t
        dd = d * d
        if apply_tail_mask:
            # Rows past the end of the slab hold unspecified DMA-edge data;
            # zero BOTH dd and m so they contribute nothing (select does not
            # propagate NaN/Inf from the unselected branch).
            row_ids = blk * block_rows + jax.lax.broadcasted_iota(
                jnp.int32, (block_rows, 1), 0)
            valid = row_ids < rows
            dd = jnp.where(valid, dd, 0.0)
            m = jnp.where(valid, m, 0.0)
        num_acc[...] += fold(dd)
        den_acc[...] += fold(m)

    if not has_tail and not has_dup:
        # Steady state everywhere: no masking cost on any step.
        accumulate(False)
    else:
        full_limit = nb - 1 if has_tail else nb

        @pl.when(blk < full_limit)
        def _():
            accumulate(False)

        if has_tail:
            @pl.when(blk == nb - 1)
            def _():
                accumulate(True)
        # blk >= nb: clamped duplicate block from an uneven shard split;
        # it must contribute nothing, so skip the compute entirely.

    @pl.when(j == pl.num_programs(1) - 1)
    def _():
        # One-time, tiny (acc_rows x 128) cross-lane/sublane reduction per shard.
        out_ref[0, 0] = jnp.sum(num_acc[...])
        out_ref[0, 1] = jnp.sum(den_acc[...])


@jax.jit
def masked_mse_loss(pred, target, mask):
    p = jnp.ravel(pred)
    t = jnp.ravel(target)
    m = jnp.ravel(mask)
    n = p.shape[0]

    # Lane alignment only: the (rows, 128) view needs n % 128 == 0.  For
    # aligned inputs this is completely free; otherwise we pay one small pad.
    lane_pad = (-n) % LANES
    if lane_pad:
        p = jnp.pad(p, (0, lane_pad))
        t = jnp.pad(t, (0, lane_pad))
        m = jnp.pad(m, (0, lane_pad))
    rows = (n + lane_pad) // LANES

    p = p.reshape(rows, LANES)
    t = t.reshape(rows, LANES)
    m = m.reshape(rows, LANES)

    # --- generation- and dtype-aware block size -----------------------------
    block_bytes, multi_core = _device_profile()
    widest = max(jnp.dtype(a.dtype).itemsize for a in (p, t, m))
    max_block_rows = block_bytes // (LANES * widest)   # multiple of ACC_ROWS

    if rows <= ACC_ROWS:
        block_rows = rows                              # full dim -> no (8,128) issue
        acc_rows = rows
    else:
        # Multiple of ACC_ROWS (hence of 8); ragged tail handled in-kernel.
        block_rows = min(max_block_rows, (rows // ACC_ROWS) * ACC_ROWS)
        acc_rows = ACC_ROWS

    nb = pl.cdiv(rows, block_rows)                     # number of row blocks
    n_shards = 2 if (multi_core and nb >= 2) else 1    # 1 on single-TC v5e/v6e
    steps = pl.cdiv(nb, n_shards)                      # row blocks per shard
    has_tail = nb * block_rows != rows                 # ragged last block
    has_dup = n_shards * steps != nb                   # uneven shard split

    def in_map(s, j):
        # Clamp so a fully out-of-range block (uneven shard split) re-reads the
        # last valid block instead of issuing an out-of-bounds DMA; the kernel
        # skips its compute entirely.
        return (jnp.minimum(s * steps + j, nb - 1), 0)

    in_spec = pl.BlockSpec((block_rows, LANES), in_map)
    out_spec = pl.BlockSpec((1, 2), lambda s, j: (s, 0),
                            memory_space=pltpu.SMEM)

    kernel = functools.partial(
        _masked_mse_kernel,
        rows=rows, block_rows=block_rows, acc_rows=acc_rows,
        steps=steps, nb=nb, has_tail=has_tail, has_dup=has_dup)

    partials = pl.pallas_call(
        kernel,
        out_shape=jax.ShapeDtypeStruct((n_shards, 2), jnp.float32),
        grid_spec=pltpu.PrefetchScalarGridSpec(
            num_scalar_prefetch=0,
            grid=(n_shards, steps),
            in_specs=[in_spec, in_spec, in_spec],
            out_specs=out_spec,
            scratch_shapes=[pltpu.VMEM((acc_rows, LANES), jnp.float32),
                            pltpu.VMEM((acc_rows, LANES), jnp.float32)],
        ),
        compiler_params=pltpu.CompilerParams(
            dimension_semantics=("parallel", "arbitrary")),
    )(p, t, m)

    num = jnp.sum(partials[:, 0])
    den = jnp.sum(partials[:, 1])
    return num / den


if __name__ == "__main__":
    key = jax.random.PRNGKey(0)
    k1, k2, k3, k4, k5, k6 = jax.random.split(key, 6)

    # Small case matching the module's docstring (batch, seq_len).
    batch, seq_len = 2, 8
    pred = jax.random.normal(k1, (batch, seq_len), dtype=jnp.float32)
    target = jax.random.normal(k2, (batch, seq_len), dtype=jnp.float32)
    mask = (jax.random.uniform(k3, (batch, seq_len)) > 0.3).astype(jnp.float32)

    loss = masked_mse_loss(pred, target, mask)
    loss = jax.block_until_ready(loss)
    ref = jnp.sum((pred * mask - target) ** 2) / jnp.sum(mask)
    assert jnp.allclose(loss, ref, rtol=1e-5, atol=1e-5), (loss, ref)

    # Larger ragged case: exercises the multi-block + (optional) shard +
    # gated tail-mask + accumulator-fold paths.
    b2, s2 = 300, 1000
    pred2 = jax.random.normal(k4, (b2, s2), dtype=jnp.float32)
    target2 = jax.random.normal(k5, (b2, s2), dtype=jnp.float32)
    mask2 = (jax.random.uniform(k6, (b2, s2)) > 0.3).astype(jnp.float32)

    loss2 = masked_mse_loss(pred2, target2, mask2)
    loss2 = jax.block_until_ready(loss2)
    ref2 = jnp.sum((pred2 * mask2 - target2) ** 2) / jnp.sum(mask2)
    assert jnp.allclose(loss2, ref2, rtol=1e-4, atol=1e-4), (loss2, ref2)

    print("KERNEL_OK")
</pallas_src>

<mosaic_0001>
module attributes {stable_mosaic.version = 11 : i64} {
  func.func @_masked_mse_kernel(%arg0: i32, %arg1: i32, %arg2: memref<1x128xf32, #tpu.memory_space<vmem>>, %arg3: memref<1x128xf32, #tpu.memory_space<vmem>>, %arg4: memref<1x128xf32, #tpu.memory_space<vmem>>, %arg5: memref<1x2xf32, #tpu.memory_space<smem>>, %arg6: memref<1x128xf32, #tpu.memory_space<vmem>>, %arg7: memref<1x128xf32, #tpu.memory_space<vmem>>) attributes {dimension_semantics = [#tpu.dimension_semantics<parallel>, #tpu.dimension_semantics<arbitrary>], iteration_bounds = array<i64: 1, 1>, scalar_prefetch = 0 : i64, scratch_operands = 2 : i64, tpu.core_type = #tpu.core_type<tc>, window_params = [{transform_indices = @transform_0, window_bounds = array<i64: 1, 128>}, {transform_indices = @transform_1, window_bounds = array<i64: 1, 128>}, {transform_indices = @transform_2, window_bounds = array<i64: 1, 128>}, {transform_indices = @transform_3, window_bounds = array<i64: 1, 2>}]} {
    %c0_i32 = arith.constant 0 : i32
    %0 = arith.cmpi eq, %arg1, %c0_i32 : i32
    %1 = arith.extui %0 : i1 to i32
    %c0_i32_0 = arith.constant 0 : i32
    %2 = arith.cmpi ne, %1, %c0_i32_0 : i32
    scf.if %2 {
      %cst = arith.constant 0.000000e+00 : f32
      %18 = vector.broadcast %cst : f32 to vector<1x128xf32>
      %c0_16 = arith.constant 0 : index
      %c0_17 = arith.constant 0 : index
      %19 = vector.load %arg6[%c0_16, %c0_17] : memref<1x128xf32, #tpu.memory_space<vmem>>, vector<1x128xf32>
      tpu.vector_store %arg6[%c0_16, %c0_17], %18 {strides = array<i32>} : memref<1x128xf32, #tpu.memory_space<vmem>>, vector<1x128xf32>,
      %cst_18 = arith.constant 0.000000e+00 : f32
      %20 = vector.broadcast %cst_18 : f32 to vector<1x128xf32>
      %c0_19 = arith.constant 0 : index
      %c0_20 = arith.constant 0 : index
      %21 = vector.load %arg7[%c0_19, %c0_20] : memref<1x128xf32, #tpu.memory_space<vmem>>, vector<1x128xf32>
      tpu.vector_store %arg7[%c0_19, %c0_20], %20 {strides = array<i32>} : memref<1x128xf32, #tpu.memory_space<vmem>>, vector<1x128xf32>,
    } else {
    }
    %c0 = arith.constant 0 : index
    %c0_1 = arith.constant 0 : index
    %3 = vector.load %arg2[%c0, %c0_1] : memref<1x128xf32, #tpu.memory_space<vmem>>, vector<1x128xf32>
    %c0_2 = arith.constant 0 : index
    %c0_3 = arith.constant 0 : index
    %4 = vector.load %arg3[%c0_2, %c0_3] : memref<1x128xf32, #tpu.memory_space<vmem>>, vector<1x128xf32>
    %c0_4 = arith.constant 0 : index
    %c0_5 = arith.constant 0 : index
    %5 = vector.load %arg4[%c0_4, %c0_5] : memref<1x128xf32, #tpu.memory_space<vmem>>, vector<1x128xf32>
    %6 = arith.mulf %3, %5 : vector<1x128xf32>
    %7 = arith.subf %6, %4 : vector<1x128xf32>
    %8 = arith.mulf %7, %7 : vector<1x128xf32>
    %c0_6 = arith.constant 0 : index
    %c0_7 = arith.constant 0 : index
    %9 = vector.load %arg6[%c0_6, %c0_7] : memref<1x128xf32, #tpu.memory_space<vmem>>, vector<1x128xf32>
    %10 = arith.addf %9, %8 : vector<1x128xf32>
    %c0_8 = arith.constant 0 : index
    %c0_9 = arith.constant 0 : index
    %11 = vector.load %arg6[%c0_8, %c0_9] : memref<1x128xf32, #tpu.memory_space<vmem>>, vector<1x128xf32>
    tpu.vector_store %arg6[%c0_8, %c0_9], %10 {strides = array<i32>} : memref<1x128xf32, #tpu.memory_space<vmem>>, vector<1x128xf32>,
    %c0_10 = arith.constant 0 : index
    %c0_11 = arith.constant 0 : index
    %12 = vector.load %arg7[%c0_10, %c0_11] : memref<1x128xf32, #tpu.memory_space<vmem>>, vector<1x128xf32>
    %13 = arith.addf %12, %5 : vector<1x128xf32>
    %c0_12 = arith.constant 0 : index
    %c0_13 = arith.constant 0 : index
    %14 = vector.load %arg7[%c0_12, %c0_13] : memref<1x128xf32, #tpu.memory_space<vmem>>, vector<1x128xf32>
    tpu.vector_store %arg7[%c0_12, %c0_13], %13 {strides = array<i32>} : memref<1x128xf32, #tpu.memory_space<vmem>>, vector<1x128xf32>,
    %c0_i32_14 = arith.constant 0 : i32
    %15 = arith.cmpi eq, %arg1, %c0_i32_14 : i32
    %16 = arith.extui %15 : i1 to i32
    %c0_i32_15 = arith.constant 0 : i32
    %17 = arith.cmpi ne, %16, %c0_i32_15 : i32
    scf.if %17 {
      %c0_16 = arith.constant 0 : index
      %c0_17 = arith.constant 0 : index
      %18 = vector.load %arg6[%c0_16, %c0_17] : memref<1x128xf32, #tpu.memory_space<vmem>>, vector<1x128xf32>
      %19 = vector.shape_cast %18 : vector<1x128xf32> to vector<1x1x128xf32>
      %cst = arith.constant dense<0.000000e+00> : vector<1xf32>
      %20 = vector.multi_reduction <add>, %19, %cst [1, 2] : vector<1x1x128xf32> to vector<1xf32>
      %21 = vector.shape_cast %20 : vector<1xf32> to vector<1x1x1xf32>
      %22 = vector.extract %21[0, 0, 0] : f32 from vector<1x1x1xf32>
      %c0_18 = arith.constant 0 : index
      %c0_19 = arith.constant 0 : index
      %23 = memref.load %arg5[%c0_18, %c0_19] : memref<1x2xf32, #tpu.memory_space<smem>>
      memref.store %22, %arg5[%c0_18, %c0_19] : memref<1x2xf32, #tpu.memory_space<smem>>
      %c0_20 = arith.constant 0 : index
      %c0_21 = arith.constant 0 : index
      %24 = vector.load %arg7[%c0_20, %c0_21] : memref<1x128xf32, #tpu.memory_space<vmem>>, vector<1x128xf32>
      %25 = vector.shape_cast %24 : vector<1x128xf32> to vector<1x1x128xf32>
      %cst_22 = arith.constant dense<0.000000e+00> : vector<1xf32>
      %26 = vector.multi_reduction <add>, %25, %cst_22 [1, 2] : vector<1x1x128xf32> to vector<1xf32>
      %27 = vector.shape_cast %26 : vector<1xf32> to vector<1x1x1xf32>
      %28 = vector.extract %27[0, 0, 0] : f32 from vector<1x1x1xf32>
      %c0_23 = arith.constant 0 : index
      %c1 = arith.constant 1 : index
      %29 = memref.load %arg5[%c0_23, %c1] : memref<1x2xf32, #tpu.memory_space<smem>>
      memref.store %28, %arg5[%c0_23, %c1] : memref<1x2xf32, #tpu.memory_space<smem>>
    } else {
    }
    return
  }
  func.func @transform_0(%arg0: i32, %arg1: i32) -> (i32, i32) {
    %c1_i32 = arith.constant 1 : i32
    %0 = arith.muli %arg0, %c1_i32 : i32
    %1 = arith.addi %0, %arg1 : i32
    %c0_i32 = arith.constant 0 : i32
    %2 = arith.minsi %1, %c0_i32 : i32
    %c0_i32_0 = arith.constant 0 : i32
    %c0_i32_1 = arith.constant 0 : i32
    return %2, %c0_i32_0 : i32, i32
  }
  func.func @transform_1(%arg0: i32, %arg1: i32) -> (i32, i32) {
    %c1_i32 = arith.constant 1 : i32
    %0 = arith.muli %arg0, %c1_i32 : i32
    %1 = arith.addi %0, %arg1 : i32
    %c0_i32 = arith.constant 0 : i32
    %2 = arith.minsi %1, %c0_i32 : i32
    %c0_i32_0 = arith.constant 0 : i32
    %c0_i32_1 = arith.constant 0 : i32
    return %2, %c0_i32_0 : i32, i32
  }
  func.func @transform_2(%arg0: i32, %arg1: i32) -> (i32, i32) {
    %c1_i32 = arith.constant 1 : i32
    %0 = arith.muli %arg0, %c1_i32 : i32
    %1 = arith.addi %0, %arg1 : i32
    %c0_i32 = arith.constant 0 : i32
    %2 = arith.minsi %1, %c0_i32 : i32
    %c0_i32_0 = arith.constant 0 : i32
    %c0_i32_1 = arith.constant 0 : i32
    return %2, %c0_i32_0 : i32, i32
  }
  func.func @transform_3(%arg0: i32, %arg1: i32) -> (i32, i32) {
    %c0_i32 = arith.constant 0 : i32
    %c0_i32_0 = arith.constant 0 : i32
    return %arg0, %c0_i32 : i32, i32
  }
}

</mosaic_0001>

<llo_original>
// kernel: masked_mse_loss.1
$region0: #{masked_mse_loss.1}
  #allocation0 [shape = 'u32[]', space=smem, size = 0x4, offset = 0x4, fixed_abs, tag = 'smem constant byte address 0x4 - core index']
  #allocation1 [shape = 'u32[144,128]{1,0:T(1,128)}', space=vmem, size = 0x12000, scoped, tag = 'internal scratch']
  #allocation2 [shape = 'f32[1,128]{1,0:T(1,128)}', space=vmem, size = 0x200, scoped, tag = 'scratch operand']
  #allocation3 [shape = 'f32[1,128]{1,0:T(1,128)}', space=vmem, size = 0x200, scoped, tag = 'scratch operand']
  %s0 = inlined_call_operand.vmem [shape: f32[1,128], index: 0, kind: input, shape index: {}]
  %s1 = inlined_call_operand.vmem [shape: f32[1,128], index: 1, kind: input, shape index: {}]
  %s2 = inlined_call_operand.vmem [shape: f32[1,128], index: 2, kind: input, shape index: {}]
  %s3 = inlined_call_operand.vmem [shape: f32[1,2], index: 3, kind: output, shape index: {}]
  %s4 = sld [smem:[#allocation0]]
  $region30: #{masked_mse_loss.1} parent=0
    _
  %s6 = ssub.s32 1, %s4
  %s7 = scalar_select 0, %s6, %s4
  $region1: #{masked_mse_loss.1} parent=0
    #allocation4 [shape = 'u8[512]{0}', space=smem, size = 0x200, scoped, tag = 'output window, operand 0, single buffered']
    #allocation5 [shape = 's32[1]{0}', space=sflag, size = 0x4, scoped, tag = 'scoped memory for masked_mse_loss.1']
    %8 = vsyncpa [#allocation5], 0
    // Predicated region
    $region2: #{masked_mse_loss.1} parent=1 // pred_check
      _
    $region3: #{masked_mse_loss.1} parent=1 // pred_check_branch
      %10 = sbr.rel (0) target = $region5
    $region4: #{masked_mse_loss.1} parent=1 // pred_region
      %s11 = sadd.s32 0, 0
      %p12 = scmp.lt.s32.totalorder %s11, 0
      %s13 = scalar_select %p12, %s11, 0
      %p14 = scmp.lt.s32.totalorder %s13, 0
      %s15 = scalar_select %p14, %s13, 0
      %s16 = scalar_lea.vmem %s0, %s15
      %s17 = sadd.s32 0, 0
      %p18 = scmp.lt.s32.totalorder %s17, 0
      %s19 = scalar_select %p18, %s17, 0
    $region5: #{masked_mse_loss.1} parent=1 // pred_fallthru
      _
    // Predicated region
    $region6: #{masked_mse_loss.1} parent=1 // pred_check
      _
    $region7: #{masked_mse_loss.1} parent=1 // pred_check_branch
      %21 = sbr.rel (0) target = $region9
    $region8: #{masked_mse_loss.1} parent=1 // pred_region
      %s22 = sadd.s32 0, 0
      %p23 = scmp.lt.s32.totalorder %s22, 0
      %s24 = scalar_select %p23, %s22, 0
      %p25 = scmp.lt.s32.totalorder %s24, 0
      %s26 = scalar_select %p25, %s24, 0
      %s27 = scalar_lea.vmem %s1, %s26
      %s28 = sadd.s32 0, 0
      %p29 = scmp.lt.s32.totalorder %s28, 0
      %s30 = scalar_select %p29, %s28, 0
    $region9: #{masked_mse_loss.1} parent=1 // pred_fallthru
      _
    // Predicated region
    $region10: #{masked_mse_loss.1} parent=1 // pred_check
      _
    $region11: #{masked_mse_loss.1} parent=1 // pred_check_branch
      %32 = sbr.rel (0) target = $region13
    $region12: #{masked_mse_loss.1} parent=1 // pred_region
      %s33 = sadd.s32 0, 0
      %p34 = scmp.lt.s32.totalorder %s33, 0
      %s35 = scalar_select %p34, %s33, 0
      %p36 = scmp.lt.s32.totalorder %s35, 0
      %s37 = scalar_select %p36, %s35, 0
      %s38 = scalar_lea.vmem %s2, %s37
      %s39 = sadd.s32 0, 0
      %p40 = scmp.lt.s32.totalorder %s39, 0
      %s41 = scalar_select %p40, %s39, 0
    $region13: #{masked_mse_loss.1} parent=1 // pred_fallthru
      _
    %s42 = sadd.s32 0, 0
    %p43 = scmp.lt.s32.totalorder %s42, 0
    %s44 = scalar_select %p43, %s42, 0
    %p45 = scmp.lt.s32.totalorder %s44, 0
    %s46 = scalar_select %p45, %s44, 0
    %s47 = scalar_lea.vmem %s0, %s46
    %s48 = sadd.s32 0, 0
    %p49 = scmp.lt.s32.totalorder %s48, 0
    %s50 = scalar_select %p49, %s48, 0
    %p51 = scmp.lt.s32.totalorder %s50, 0
    %s52 = scalar_select %p51, %s50, 0
    %s53 = scalar_lea.vmem %s1, %s52
    %s54 = sadd.s32 0, 0
    %p55 = scmp.lt.s32.totalorder %s54, 0
    %s56 = scalar_select %p55, %s54, 0
    %p57 = scmp.lt.s32.totalorder %s56, 0
    %s58 = scalar_select %p57, %s56, 0
    %s59 = scalar_lea.vmem %s2, %s58
    %s60 = sadd.s32 0, 0
    %p61 = scmp.lt.s32.totalorder %s60, 0
    %s62 = scalar_select %p61, %s60, 0
    %p63 = scmp.lt.s32.totalorder %s62, 0
    %s64 = scalar_select %p63, %s62, 0
    %s65 = scalar_lea.vmem %s0, %s64
    %s66 = sadd.s32 0, 0
    %p67 = scmp.lt.s32.totalorder %s66, 0
    %s68 = scalar_select %p67, %s66, 0
    %s69 = sadd.s32 0, 0
    %p70 = scmp.lt.s32.totalorder %s69, 0
    %s71 = scalar_select %p70, %s69, 0
    %p72 = scmp.lt.s32.totalorder %s71, 0
    %s73 = scalar_select %p72, %s71, 0
    %s74 = scalar_lea.vmem %s1, %s73
    %s75 = sadd.s32 0, 0
    %p76 = scmp.lt.s32.totalorder %s75, 0
    %s77 = scalar_select %p76, %s75, 0
    %s78 = sadd.s32 0, 0
    %p79 = scmp.lt.s32.totalorder %s78, 0
    %s80 = scalar_select %p79, %s78, 0
    %p81 = scmp.lt.s32.totalorder %s80, 0
    %s82 = scalar_select %p81, %s80, 0
    %s83 = scalar_lea.vmem %s2, %s82
    %s84 = sadd.s32 0, 0
    %p85 = scmp.lt.s32.totalorder %s84, 0
    %s86 = scalar_select %p85, %s84, 0
    %p87 = scmp.eq.s32.totalorder 0, 0
    // Predicated region
    $region14: #{masked_mse_loss.1} parent=1 // pred_check
      %p88 = pneg %p87
    $region15: #{masked_mse_loss.1} parent=1 // pred_check_branch
      %90 = sbr.rel (%p88) target = $region17
    $region16: #{masked_mse_loss.1} parent=1 // pred_region
      %91 = vst [vmem:[#allocation2] sm:$0x1] 0.0
      %92 = vst [vmem:[#allocation3] sm:$0x1] 0.0
    $region17: #{masked_mse_loss.1} parent=1 // pred_fallthru
      _
    %v93 = vld [vmem:[%s65] sm:$0x1]
    %v94 = vld [vmem:[%s74] sm:$0x1]
    %v95 = vld [vmem:[%s83] sm:$0x1]
    %v96 = vmul.f32 %v93, %v95
    %v97 = vsub.f32 %v96, %v94
    %v98 = vmul.f32 %v97, %v97
    %v99 = vld [vmem:[#allocation2] sm:$0x1]
    %v100 = vadd.f32 %v99, %v98
    %101 = vst [vmem:[#allocation2] sm:$0x1] %v100
    %v102 = vld [vmem:[#allocation3] sm:$0x1]
    %v103 = vadd.f32 %v102, %v95
    %104 = vst [vmem:[#allocation3] sm:$0x1] %v103
    // Predicated region
    $region18: #{masked_mse_loss.1} parent=1 // pred_check
      %p105 = pneg %p87
    $region19: #{masked_mse_loss.1} parent=1 // pred_check_branch
      %107 = sbr.rel (%p105) target = $region21
    $region20: #{masked_mse_loss.1} parent=1 // pred_region
      %v108 = vld [vmem:[#allocation2] sm:$0x1]
      %vm109 = vcmask 1040384
      %v110 = vsel %vm109, %v108, 0.0
      %111 = vadd.xlane.f32.xlu0 %v110
      %v112 = vpop.xlane.xlu0 %111
      %v113 = vrot.slane %v112, 4
      %v114 = vadd.f32 %v112, %v113
      %v115 = vrot.slane %v114, 2
      %v116 = vadd.f32 %v114, %v115
      %v117 = vrot.slane %v116, 1
      %v118 = vadd.f32 %v116, %v117
      %s119 = vtos %v118
      %s120 = scalar_lea.smem [#allocation4], 0
      %121 = sst [smem:[%s120]] %s119
      %v122 = vld [vmem:[#allocation3] sm:$0x1]
      %v123 = vsel %vm109, %v122, 0.0
      %124 = vadd.xlane.f32.xlu0 %v123
      %v125 = vpop.xlane.xlu0 %124
      %v126 = vrot.slane %v125, 4
      %v127 = vadd.f32 %v125, %v126
      %v128 = vrot.slane %v127, 2
      %v129 = vadd.f32 %v127, %v128
      %v130 = vrot.slane %v129, 1
      %v131 = vadd.f32 %v129, %v130
      %s132 = vtos %v131
      %s133 = scalar_lea.smem [#allocation4], 1
      %134 = sst [smem:[%s133]] %s132
    $region21: #{masked_mse_loss.1} parent=1 // pred_fallthru
      _
    // Predicated region
    $region22: #{masked_mse_loss.1} parent=1 // pred_check
      _
    $region23: #{masked_mse_loss.1} parent=1 // pred_check_branch
      %136 = sbr.rel (0) target = $region25
    $region24: #{masked_mse_loss.1} parent=1 // pred_region
      %s138 = ssub.s32 16, 16
      %139 = vsyncadd [#allocation5], %s138
      %s141 = sshll.u32 %s3, 4
      %s142 = int_to_ptr.vmem [resolvable:$true] %s141
      %144 = dma.smem_to_vmem [#allocation4], 16, %s142, [#allocation5]
    $region25: #{masked_mse_loss.1} parent=1 // pred_fallthru
      _
    // Predicated region
    $region26: #{masked_mse_loss.1} parent=1 // pred_check
      _
    $region27: #{masked_mse_loss.1} parent=1 // pred_check_branch
      %146 = sbr.rel (0) target = $region29
    $region28: #{masked_mse_loss.1} parent=1 // pred_region
      %147 = dma.done [#allocation5], 16
    $region29: #{masked_mse_loss.1} parent=1 // pred_fallthru
      _
    %148 = sfence
    %149 = vsyncpa [#allocation5], 1

</llo_original>
